<compile_context>
chip_gen: v5e
topology: v5e:2x2
jax: 0.10.0
libtpu: 0.0.40
codegen_flags: <defaults>
</compile_context>

<pallas_src>
import math
import functools

import jax
import jax.numpy as jnp
from jax.experimental import pallas as pl
from jax.experimental.pallas import tpu as pltpu


def _context_attention_kernel(
    ref_ref,    # (B, T, H)   reference block
    ctx_ref,    # (Tc, B, G)  context block (time-major so ctx_ref[c] is (B, G))
    wr_ref,     # (H, A)      reference_projection weight, pre-transposed, A lane-padded
    br_ref,     # (1, A)      reference_projection bias (lane-padded with zeros)
    wc_ref,     # (G, A)      context_projection weight, pre-transposed, lane-padded
    bc_ref,     # (1, A)      context_projection bias (lane-padded)
    wh_ref,     # (T, Tc)     context_hidden_projection weight (Linear Tc -> T)
    bh_ref,     # (T, 1)      context_hidden_projection bias
    wa_ref,     # (1, A)      alpha_projection weight (lane-padded with zeros)
    out_ref,    # (B, H)      attention-filtered output
    alpha_ref,  # (B, T)      attention weights
    *,
    inv_temperature: float,
    use_hidden_proj: bool,
    ctx_seq_len: int,
):
    B, T, H = ref_ref.shape
    A = wr_ref.shape[1]

    ref = ref_ref[...]                                   # (B, T, H)
    # Merge (B, T) so the whole block is ONE MXU matmul. With T a multiple of 8
    # (sublane width) this reshape is a no-op on the tiled layout.
    ref2 = ref.reshape(B * T, H)

    # reference_projection: Linear(H -> A), one pass for the whole block.
    ref_a = (
        jnp.dot(ref2, wr_ref[...], preferred_element_type=jnp.float32)
        + br_ref[...]
    ).reshape(B, T, A)                                    # (B, T, A)

    wc = wc_ref[...]                                      # (G, A)
    if use_hidden_proj:
        # context_projection followed by context_hidden_projection
        # (applied along the seq axis after permute(0,2,1)):
        #   ctx_a[b,t,a] = bh[t] + sum_c wh[t,c] * ((ctx[b,c,:] @ wc)[a] + bc[a])
        # Fold the bc bias through the hidden projection, then accumulate the
        # data term per context time-step (Tc is small and static).
        wh = wh_ref[...]                                  # (T, Tc)
        bh = bh_ref[...]                                  # (T, 1)
        ctx_a = (bh + jnp.sum(wh, axis=1, keepdims=True) * bc_ref[...])[None]  # (1, T, A)
        for c in range(ctx_seq_len):
            # One (B, G) @ (G, A) pass per context step; M = B_BLK rows.
            pc = jnp.dot(ctx_ref[c], wc, preferred_element_type=jnp.float32)   # (B, A)
            ctx_a = ctx_a + wh[:, c:c + 1][None] * pc[:, None, :]              # (B, T, A)
        # TODO(synk): for large Tc a single (B*Tc, G) @ (G, A) matmul followed by a
        # batched Tc->T contraction would be preferable to the unrolled loop.
    else:
        # Tc == 1: identity hidden projection; (B, 1, A) broadcasts over T.
        pc = jnp.dot(ctx_ref[0], wc, preferred_element_type=jnp.float32) + bc_ref[...]
        ctx_a = pc[:, None, :]                            # (B, 1, A)

    e = jnp.tanh(ref_a + ctx_a)                           # (B, T, A)

    # alpha_projection: Linear(A -> 1, bias=False) as a VPU multiply + lane
    # reduce (avoids a lane-width-1 MXU result); divide by temperature becomes
    # a multiply by a constant. Zero-padded A columns of wa contribute 0.
    scores = jnp.sum(e * wa_ref[...][None], axis=-1) * inv_temperature         # (B, T)

    # Softmax over the sequence axis (numerically stabilised); the reciprocal
    # runs on the otherwise-idle EUP slot.
    m = jnp.max(scores, axis=-1, keepdims=True)
    p = jnp.exp(scores - m)
    denom = jnp.sum(p, axis=-1, keepdims=True)
    alphas = p * pl.reciprocal(denom, approx=True)        # (B, T)

    # output = sum_T reference * alphas   (average_seq=True path)
    out = jnp.sum(ref * alphas[:, :, None], axis=1)       # (B, H)
    # TODO(synk): average_seq=False path (bs x T output) not implemented in-kernel.

    out_ref[...] = out.astype(out_ref.dtype)
    alpha_ref[...] = alphas.astype(alpha_ref.dtype)


def context_attention_forward(
    reference, context, params, *, temperature=1.0, block_b=128, lane=128
):
    """Pallas implementation of ContextAttentionLayer.forward (average_seq=True)."""
    bs, T, H = reference.shape
    _, Tc, G = context.shape
    A = params["wr"].shape[0]
    use_hidden_proj = Tc > 1
    out_dtype = reference.dtype

    # ---- Weight prep (trace-time, outside the kernel): transpose to (in, out)
    # layout and zero-pad the attention dim to the lane width. Padded columns
    # of wa/br/bc are zero, so they contribute nothing to the scores.
    A_pad = ((A + lane - 1) // lane) * lane
    pad_cols = A_pad - A

    def pad_a(x):
        return jnp.pad(x, ((0, 0), (0, pad_cols))) if pad_cols else x

    wr_t = pad_a(params["wr"].T)   # (H, A_pad)
    wc_t = pad_a(params["wc"].T)   # (G, A_pad)
    br = pad_a(params["br"])       # (1, A_pad)
    bc = pad_a(params["bc"])       # (1, A_pad)
    wa = pad_a(params["wa"])       # (1, A_pad)
    wh = params["wh"]              # (T, Tc)
    bh = params["bh"]              # (T, 1)

    # ---- Batch blocking: whole batch in one block when small, otherwise
    # 128-row (multiple-of-8) blocks with zero padding of the remainder.
    B_BLK = bs if bs <= block_b else block_b
    num_blocks = (bs + B_BLK - 1) // B_BLK
    bs_pad = num_blocks * B_BLK
    if bs_pad != bs:
        reference = jnp.pad(reference, ((0, bs_pad - bs), (0, 0), (0, 0)))
        context = jnp.pad(context, ((0, bs_pad - bs), (0, 0), (0, 0)))

    # Time-major context so the kernel indexes per-time-step (B, G) slabs with a
    # plain leading-dim index (no unaligned in-kernel reshape for small Tc).
    context_t = jnp.transpose(context, (1, 0, 2))         # (Tc, bs_pad, G)

    kernel = functools.partial(
        _context_attention_kernel,
        inv_temperature=1.0 / float(temperature),
        use_hidden_proj=use_hidden_proj,
        ctx_seq_len=Tc,
    )

    out, alphas = pl.pallas_call(
        kernel,
        out_shape=(
            jax.ShapeDtypeStruct((bs_pad, H), out_dtype),
            jax.ShapeDtypeStruct((bs_pad, T), out_dtype),
        ),
        grid_spec=pltpu.PrefetchScalarGridSpec(
            num_scalar_prefetch=0,
            grid=(num_blocks,),
            in_specs=[
                pl.BlockSpec((B_BLK, T, H), lambda b: (b, 0, 0)),
                pl.BlockSpec((Tc, B_BLK, G), lambda b: (0, b, 0)),
                # Weights: constant index map -> fetched once, kept resident.
                pl.BlockSpec((H, A_pad), lambda b: (0, 0)),
                pl.BlockSpec((1, A_pad), lambda b: (0, 0)),
                pl.BlockSpec((G, A_pad), lambda b: (0, 0)),
                pl.BlockSpec((1, A_pad), lambda b: (0, 0)),
                pl.BlockSpec((T, Tc), lambda b: (0, 0)),
                pl.BlockSpec((T, 1), lambda b: (0, 0)),
                pl.BlockSpec((1, A_pad), lambda b: (0, 0)),
            ],
            out_specs=[
                pl.BlockSpec((B_BLK, H), lambda b: (b, 0)),
                pl.BlockSpec((B_BLK, T), lambda b: (b, 0)),
            ],
        ),
        compiler_params=pltpu.CompilerParams(
            dimension_semantics=("parallel",),
        ),
    )(reference, context_t, wr_t, br, wc_t, bc, wh, bh, wa)

    if bs_pad != bs:
        out, alphas = out[:bs], alphas[:bs]
    return out, alphas


def init_params(key, *, H, G, T, Tc, A):
    """PyTorch-Linear-style init U(-1/sqrt(fan_in), 1/sqrt(fan_in)) (weights in torch layout)."""
    ks = jax.random.split(key, 7)

    def u(k, shape, fan_in):
        s = 1.0 / math.sqrt(fan_in)
        return jax.random.uniform(k, shape, jnp.float32, -s, s)

    return {
        "wr": u(ks[0], (A, H), H),
        "br": u(ks[1], (1, A), H),
        "wc": u(ks[2], (A, G), G),
        "bc": u(ks[3], (1, A), G),
        "wh": u(ks[4], (T, Tc), Tc),
        "bh": u(ks[5], (T, 1), Tc),
        "wa": u(ks[6], (1, A), A),
    }


def _reference_forward(reference, context, params, temperature=1.0):
    """Pure-JAX reference matching the PyTorch module semantics."""
    ref_a = jnp.einsum("bth,ah->bta", reference, params["wr"]) + params["br"][0]
    ctx_p = jnp.einsum("bcg,ag->bca", context, params["wc"]) + params["bc"][0]
    Tc = context.shape[1]
    if Tc > 1:
        ctx_a = (
            jnp.einsum("bca,tc->bta", ctx_p, params["wh"])
            + params["bh"][:, 0][None, :, None]
        )
    else:
        ctx_a = ctx_p
    e = jnp.tanh(ref_a + ctx_a)
    scores = jnp.einsum("bta,a->bt", e, params["wa"][0]) / temperature
    alphas = jax.nn.softmax(scores, axis=1)
    out = jnp.sum(reference * alphas[..., None], axis=1)
    return out, alphas


if __name__ == "__main__":
    # Small deterministic shapes consistent with the module's forward.
    bs, T, H = 2, 8, 32      # batch, reference seq len, reference hidden
    Tc, G = 4, 16            # context seq len (>1 -> hidden projection used), context hidden
    A = 16                   # attention size
    temperature = 1.0

    key = jax.random.PRNGKey(0)
    k_ref, k_ctx, k_par, k_ctx1, k_par1 = jax.random.split(key, 5)

    reference = jax.random.normal(k_ref, (bs, T, H), jnp.float32)
    context = jax.random.normal(k_ctx, (bs, Tc, G), jnp.float32)
    params = init_params(k_par, H=H, G=G, T=T, Tc=Tc, A=A)

    out, alphas = context_attention_forward(
        reference, context, params, temperature=temperature
    )
    jax.block_until_ready((out, alphas))

    out_ref, alphas_ref = _reference_forward(reference, context, params, temperature)
    assert out.shape == (bs, H) and alphas.shape == (bs, T)
    # Tolerance accounts for the EUP approximate reciprocal in the softmax.
    assert jnp.allclose(out, out_ref, atol=2e-3, rtol=2e-3)
    assert jnp.allclose(alphas, alphas_ref, atol=2e-3, rtol=2e-3)

    # Tc == 1 path (identity context_hidden_projection), different temperature.
    context1 = jax.random.normal(k_ctx1, (bs, 1, G), jnp.float32)
    params1 = init_params(k_par1, H=H, G=G, T=T, Tc=1, A=A)
    out1, alphas1 = context_attention_forward(
        reference, context1, params1, temperature=0.5
    )
    jax.block_until_ready((out1, alphas1))
    out1_ref, alphas1_ref = _reference_forward(reference, context1, params1, 0.5)
    assert jnp.allclose(out1, out1_ref, atol=2e-3, rtol=2e-3)
    assert jnp.allclose(alphas1, alphas1_ref, atol=2e-3, rtol=2e-3)

    print("KERNEL_OK")
</pallas_src>

<mosaic_0001>
module attributes {stable_mosaic.version = 11 : i64} {
  func.func @_context_attention_kernel(%arg0: i32, %arg1: memref<2x8x32xf32, #tpu.memory_space<vmem>>, %arg2: memref<4x2x16xf32, #tpu.memory_space<vmem>>, %arg3: memref<32x128xf32, #tpu.memory_space<vmem>>, %arg4: memref<1x128xf32, #tpu.memory_space<vmem>>, %arg5: memref<16x128xf32, #tpu.memory_space<vmem>>, %arg6: memref<1x128xf32, #tpu.memory_space<vmem>>, %arg7: memref<8x4xf32, #tpu.memory_space<vmem>>, %arg8: memref<8x1xf32, #tpu.memory_space<vmem>>, %arg9: memref<1x128xf32, #tpu.memory_space<vmem>>, %arg10: memref<2x32xf32, #tpu.memory_space<vmem>>, %arg11: memref<2x8xf32, #tpu.memory_space<vmem>>) attributes {dimension_semantics = [#tpu.dimension_semantics<parallel>], iteration_bounds = array<i64: 1>, scalar_prefetch = 0 : i64, scratch_operands = 0 : i64, tpu.core_type = #tpu.core_type<tc>, window_params = [{transform_indices = @transform_0, window_bounds = array<i64: 2, 8, 32>}, {transform_indices = @transform_1, window_bounds = array<i64: 4, 2, 16>}, {pipeline_mode = #tpu.pipeline_mode<synchronous>, transform_indices = @transform_2, window_bounds = array<i64: 32, 128>}, {pipeline_mode = #tpu.pipeline_mode<synchronous>, transform_indices = @transform_3, window_bounds = array<i64: 1, 128>}, {pipeline_mode = #tpu.pipeline_mode<synchronous>, transform_indices = @transform_4, window_bounds = array<i64: 16, 128>}, {pipeline_mode = #tpu.pipeline_mode<synchronous>, transform_indices = @transform_5, window_bounds = array<i64: 1, 128>}, {pipeline_mode = #tpu.pipeline_mode<synchronous>, transform_indices = @transform_6, window_bounds = array<i64: 8, 4>}, {pipeline_mode = #tpu.pipeline_mode<synchronous>, transform_indices = @transform_7, window_bounds = array<i64: 8, 1>}, {pipeline_mode = #tpu.pipeline_mode<synchronous>, transform_indices = @transform_8, window_bounds = array<i64: 1, 128>}, {transform_indices = @transform_9, window_bounds = array<i64: 2, 32>}, {transform_indices = @transform_10, window_bounds = array<i64: 2, 8>}]} {
    %c0 = arith.constant 0 : index
    %c0_0 = arith.constant 0 : index
    %c0_1 = arith.constant 0 : index
    %0 = vector.load %arg1[%c0, %c0_0, %c0_1] : memref<2x8x32xf32, #tpu.memory_space<vmem>>, vector<2x8x32xf32>
    %1 = vector.shape_cast %0 : vector<2x8x32xf32> to vector<16x32xf32>
    %c0_2 = arith.constant 0 : index
    %c0_3 = arith.constant 0 : index
    %2 = vector.load %arg3[%c0_2, %c0_3] : memref<32x128xf32, #tpu.memory_space<vmem>>, vector<32x128xf32>
    %cst = arith.constant dense<0.000000e+00> : vector<16x128xf32>
    %3 = tpu.matmul %1, %2, %cst {dimension_numbers = #tpu.dot_dimension_numbers<[1], [0], [0], [1], [0, 0, 1, 1], [], []>} : vector<16x32xf32>, vector<32x128xf32>, vector<16x128xf32> -> vector<16x128xf32>
    %c0_4 = arith.constant 0 : index
    %c0_5 = arith.constant 0 : index
    %4 = vector.load %arg4[%c0_4, %c0_5] : memref<1x128xf32, #tpu.memory_space<vmem>>, vector<1x128xf32>
    %5 = vector.broadcast %4 : vector<1x128xf32> to vector<16x128xf32>
    %6 = arith.addf %3, %5 : vector<16x128xf32>
    %7 = vector.shape_cast %6 : vector<16x128xf32> to vector<2x8x128xf32>
    %c0_6 = arith.constant 0 : index
    %c0_7 = arith.constant 0 : index
    %8 = vector.load %arg5[%c0_6, %c0_7] : memref<16x128xf32, #tpu.memory_space<vmem>>, vector<16x128xf32>
    %c0_8 = arith.constant 0 : index
    %c0_9 = arith.constant 0 : index
    %9 = vector.load %arg7[%c0_8, %c0_9] : memref<8x4xf32, #tpu.memory_space<vmem>>, vector<8x4xf32>
    %c0_10 = arith.constant 0 : index
    %c0_11 = arith.constant 0 : index
    %10 = vector.load %arg8[%c0_10, %c0_11] : memref<8x1xf32, #tpu.memory_space<vmem>>, vector<8x1xf32>
    %cst_12 = arith.constant dense<0.000000e+00> : vector<8xf32>
    %11 = vector.multi_reduction <add>, %9, %cst_12 [1] : vector<8x4xf32> to vector<8xf32>
    %12 = vector.shape_cast %11 : vector<8xf32> to vector<8x1xf32>
    %c0_13 = arith.constant 0 : index
    %c0_14 = arith.constant 0 : index
    %13 = vector.load %arg6[%c0_13, %c0_14] : memref<1x128xf32, #tpu.memory_space<vmem>>, vector<1x128xf32>
    %14 = vector.broadcast %12 : vector<8x1xf32> to vector<8x128xf32>
    %15 = vector.broadcast %13 : vector<1x128xf32> to vector<8x128xf32>
    %16 = arith.mulf %14, %15 : vector<8x128xf32>
    %17 = vector.broadcast %10 : vector<8x1xf32> to vector<8x128xf32>
    %18 = arith.addf %17, %16 : vector<8x128xf32>
    %19 = vector.shape_cast %18 : vector<8x128xf32> to vector<1x8x128xf32>
    %c0_15 = arith.constant 0 : index
    %c0_16 = arith.constant 0 : index
    %c0_17 = arith.constant 0 : index
    %20 = vector.load %arg2[%c0_15, %c0_16, %c0_17] : memref<4x2x16xf32, #tpu.memory_space<vmem>>, vector<1x2x16xf32>
    %21 = vector.shape_cast %20 : vector<1x2x16xf32> to vector<2x16xf32>
    %cst_18 = arith.constant dense<0.000000e+00> : vector<2x128xf32>
    %22 = tpu.matmul %21, %8, %cst_18 {dimension_numbers = #tpu.dot_dimension_numbers<[1], [0], [0], [1], [0, 0, 1, 1], [], []>} : vector<2x16xf32>, vector<16x128xf32>, vector<2x128xf32> -> vector<2x128xf32>
    %23 = vector.extract_strided_slice %9 {offsets = [0, 0], sizes = [8, 1], strides = [1, 1]} : vector<8x4xf32> to vector<8x1xf32>
    %24 = vector.shape_cast %23 : vector<8x1xf32> to vector<1x8x1xf32>
    %25 = vector.shape_cast %22 : vector<2x128xf32> to vector<2x1x128xf32>
    %26 = vector.broadcast %24 : vector<1x8x1xf32> to vector<2x8x128xf32>
    %27 = vector.broadcast %25 : vector<2x1x128xf32> to vector<2x8x128xf32>
    %28 = arith.mulf %26, %27 : vector<2x8x128xf32>
    %29 = vector.broadcast %19 : vector<1x8x128xf32> to vector<2x8x128xf32>
    %30 = arith.addf %29, %28 : vector<2x8x128xf32>
    %c1 = arith.constant 1 : index
    %c0_19 = arith.constant 0 : index
    %c0_20 = arith.constant 0 : index
    %31 = vector.load %arg2[%c1, %c0_19, %c0_20] : memref<4x2x16xf32, #tpu.memory_space<vmem>>, vector<1x2x16xf32>
    %32 = vector.shape_cast %31 : vector<1x2x16xf32> to vector<2x16xf32>
    %cst_21 = arith.constant dense<0.000000e+00> : vector<2x128xf32>
    %33 = tpu.matmul %32, %8, %cst_21 {dimension_numbers = #tpu.dot_dimension_numbers<[1], [0], [0], [1], [0, 0, 1, 1], [], []>} : vector<2x16xf32>, vector<16x128xf32>, vector<2x128xf32> -> vector<2x128xf32>
    %34 = vector.extract_strided_slice %9 {offsets = [0, 1], sizes = [8, 1], strides = [1, 1]} : vector<8x4xf32> to vector<8x1xf32>
    %35 = vector.shape_cast %34 : vector<8x1xf32> to vector<1x8x1xf32>
    %36 = vector.shape_cast %33 : vector<2x128xf32> to vector<2x1x128xf32>
    %37 = vector.broadcast %35 : vector<1x8x1xf32> to vector<2x8x128xf32>
    %38 = vector.broadcast %36 : vector<2x1x128xf32> to vector<2x8x128xf32>
    %39 = arith.mulf %37, %38 : vector<2x8x128xf32>
    %40 = arith.addf %30, %39 : vector<2x8x128xf32>
    %c2 = arith.constant 2 : index
    %c0_22 = arith.constant 0 : index
    %c0_23 = arith.constant 0 : index
    %41 = vector.load %arg2[%c2, %c0_22, %c0_23] : memref<4x2x16xf32, #tpu.memory_space<vmem>>, vector<1x2x16xf32>
    %42 = vector.shape_cast %41 : vector<1x2x16xf32> to vector<2x16xf32>
    %cst_24 = arith.constant dense<0.000000e+00> : vector<2x128xf32>
    %43 = tpu.matmul %42, %8, %cst_24 {dimension_numbers = #tpu.dot_dimension_numbers<[1], [0], [0], [1], [0, 0, 1, 1], [], []>} : vector<2x16xf32>, vector<16x128xf32>, vector<2x128xf32> -> vector<2x128xf32>
    %44 = vector.extract_strided_slice %9 {offsets = [0, 2], sizes = [8, 1], strides = [1, 1]} : vector<8x4xf32> to vector<8x1xf32>
    %45 = vector.shape_cast %44 : vector<8x1xf32> to vector<1x8x1xf32>
    %46 = vector.shape_cast %43 : vector<2x128xf32> to vector<2x1x128xf32>
    %47 = vector.broadcast %45 : vector<1x8x1xf32> to vector<2x8x128xf32>
    %48 = vector.broadcast %46 : vector<2x1x128xf32> to vector<2x8x128xf32>
    %49 = arith.mulf %47, %48 : vector<2x8x128xf32>
    %50 = arith.addf %40, %49 : vector<2x8x128xf32>
    %c3 = arith.constant 3 : index
    %c0_25 = arith.constant 0 : index
    %c0_26 = arith.constant 0 : index
    %51 = vector.load %arg2[%c3, %c0_25, %c0_26] : memref<4x2x16xf32, #tpu.memory_space<vmem>>, vector<1x2x16xf32>
    %52 = vector.shape_cast %51 : vector<1x2x16xf32> to vector<2x16xf32>
    %cst_27 = arith.constant dense<0.000000e+00> : vector<2x128xf32>
    %53 = tpu.matmul %52, %8, %cst_27 {dimension_numbers = #tpu.dot_dimension_numbers<[1], [0], [0], [1], [0, 0, 1, 1], [], []>} : vector<2x16xf32>, vector<16x128xf32>, vector<2x128xf32> -> vector<2x128xf32>
    %54 = vector.extract_strided_slice %9 {offsets = [0, 3], sizes = [8, 1], strides = [1, 1]} : vector<8x4xf32> to vector<8x1xf32>
    %55 = vector.shape_cast %54 : vector<8x1xf32> to vector<1x8x1xf32>
    %56 = vector.shape_cast %53 : vector<2x128xf32> to vector<2x1x128xf32>
    %57 = vector.broadcast %55 : vector<1x8x1xf32> to vector<2x8x128xf32>
    %58 = vector.broadcast %56 : vector<2x1x128xf32> to vector<2x8x128xf32>
    %59 = arith.mulf %57, %58 : vector<2x8x128xf32>
    %60 = arith.addf %50, %59 : vector<2x8x128xf32>
    %61 = arith.addf %7, %60 : vector<2x8x128xf32>
    %62 = math.tanh %61 : vector<2x8x128xf32>
    %c0_28 = arith.constant 0 : index
    %c0_29 = arith.constant 0 : index
    %63 = vector.load %arg9[%c0_28, %c0_29] : memref<1x128xf32, #tpu.memory_space<vmem>>, vector<1x128xf32>
    %64 = vector.shape_cast %63 : vector<1x128xf32> to vector<1x1x128xf32>
    %65 = vector.broadcast %64 : vector<1x1x128xf32> to vector<2x8x128xf32>
    %66 = arith.mulf %62, %65 : vector<2x8x128xf32>
    %cst_30 = arith.constant dense<0.000000e+00> : vector<2x8xf32>
    %67 = vector.multi_reduction <add>, %66, %cst_30 [2] : vector<2x8x128xf32> to vector<2x8xf32>
    %cst_31 = arith.constant 1.000000e+00 : f32
    %68 = vector.broadcast %cst_31 : f32 to vector<2x8xf32>
    %69 = arith.mulf %67, %68 : vector<2x8xf32>
    %cst_32 = arith.constant dense<0xFF800000> : vector<2xf32>
    %70 = vector.multi_reduction <maximumf>, %69, %cst_32 [1] : vector<2x8xf32> to vector<2xf32>
    %71 = vector.shape_cast %70 : vector<2xf32> to vector<2x1xf32>
    %72 = vector.broadcast %71 : vector<2x1xf32> to vector<2x8xf32>
    %73 = arith.subf %69, %72 : vector<2x8xf32>
    %74 = math.exp %73 : vector<2x8xf32>
    %cst_33 = arith.constant dense<0.000000e+00> : vector<2xf32>
    %75 = vector.multi_reduction <add>, %74, %cst_33 [1] : vector<2x8xf32> to vector<2xf32>
    %76 = vector.shape_cast %75 : vector<2xf32> to vector<2x1xf32>
    %77 = tpu.reciprocal %76 {approx = true} : vector<2x1xf32> -> vector<2x1xf32>
    %78 = vector.broadcast %77 : vector<2x1xf32> to vector<2x8xf32>
    %79 = arith.mulf %74, %78 : vector<2x8xf32>
    %80 = vector.shape_cast %79 : vector<2x8xf32> to vector<2x8x1xf32>
    %81 = vector.broadcast %80 : vector<2x8x1xf32> to vector<2x8x32xf32>
    %82 = arith.mulf %0, %81 : vector<2x8x32xf32>
    %cst_34 = arith.constant dense<0.000000e+00> : vector<2x32xf32>
    %83 = vector.multi_reduction <add>, %82, %cst_34 [1] : vector<2x8x32xf32> to vector<2x32xf32>
    %c0_35 = arith.constant 0 : index
    %c0_36 = arith.constant 0 : index
    %84 = vector.load %arg10[%c0_35, %c0_36] : memref<2x32xf32, #tpu.memory_space<vmem>>, vector<2x32xf32>
    tpu.vector_store %arg10[%c0_35, %c0_36], %83 {strides = array<i32>} : memref<2x32xf32, #tpu.memory_space<vmem>>, vector<2x32xf32>,
    %c0_37 = arith.constant 0 : index
    %c0_38 = arith.constant 0 : index
    %85 = vector.load %arg11[%c0_37, %c0_38] : memref<2x8xf32, #tpu.memory_space<vmem>>, vector<2x8xf32>
    tpu.vector_store %arg11[%c0_37, %c0_38], %79 {strides = array<i32>} : memref<2x8xf32, #tpu.memory_space<vmem>>, vector<2x8xf32>,
    return
  }
  func.func @transform_0(%arg0: i32) -> (i32, i32, i32) {
    %c0_i32 = arith.constant 0 : i32
    %c0_i32_0 = arith.constant 0 : i32
    %c0_i32_1 = arith.constant 0 : i32
    return %arg0, %c0_i32, %c0_i32_0 : i32, i32, i32
  }
  func.func @transform_1(%arg0: i32) -> (i32, i32, i32) {
    %c0_i32 = arith.constant 0 : i32
    %c0_i32_0 = arith.constant 0 : i32
    %c0_i32_1 = arith.constant 0 : i32
    return %c0_i32, %arg0, %c0_i32_0 : i32, i32, i32
  }
  func.func @transform_2(%arg0: i32) -> (i32, i32) {
    %c0_i32 = arith.constant 0 : i32
    %c0_i32_0 = arith.constant 0 : i32
    %c0_i32_1 = arith.constant 0 : i32
    return %c0_i32, %c0_i32_0 : i32, i32
  }
  func.func @transform_3(%arg0: i32) -> (i32, i32) {
    %c0_i32 = arith.constant 0 : i32
    %c0_i32_0 = arith.constant 0 : i32
    %c0_i32_1 = arith.constant 0 : i32
    return %c0_i32, %c0_i32_0 : i32, i32
  }
  func.func @transform_4(%arg0: i32) -> (i32, i32) {
    %c0_i32 = arith.constant 0 : i32
    %c0_i32_0 = arith.constant 0 : i32
    %c0_i32_1 = arith.constant 0 : i32
    return %c0_i32, %c0_i32_0 : i32, i32
  }
  func.func @transform_5(%arg0: i32) -> (i32, i32) {
    %c0_i32 = arith.constant 0 : i32
    %c0_i32_0 = arith.constant 0 : i32
    %c0_i32_1 = arith.constant 0 : i32
    return %c0_i32, %c0_i32_0 : i32, i32
  }
  func.func @transform_6(%arg0: i32) -> (i32, i32) {
    %c0_i32 = arith.constant 0 : i32
    %c0_i32_0 = arith.constant 0 : i32
    %c0_i32_1 = arith.constant 0 : i32
    return %c0_i32, %c0_i32_0 : i32, i32
  }
  func.func @transform_7(%arg0: i32) -> (i32, i32) {
    %c0_i32 = arith.constant 0 : i32
    %c0_i32_0 = arith.constant 0 : i32
    %c0_i32_1 = arith.constant 0 : i32
    return %c0_i32, %c0_i32_0 : i32, i32
  }
  func.func @transform_8(%arg0: i32) -> (i32, i32) {
    %c0_i32 = arith.constant 0 : i32
    %c0_i32_0 = arith.constant 0 : i32
    %c0_i32_1 = arith.constant 0 : i32
    return %c0_i32, %c0_i32_0 : i32, i32
  }
  func.func @transform_9(%arg0: i32) -> (i32, i32) {
    %c0_i32 = arith.constant 0 : i32
    %c0_i32_0 = arith.constant 0 : i32
    return %arg0, %c0_i32 : i32, i32
  }
  func.func @transform_10(%arg0: i32) -> (i32, i32) {
    %c0_i32 = arith.constant 0 : i32
    %c0_i32_0 = arith.constant 0 : i32
    return %arg0, %c0_i32 : i32, i32
  }
}

</mosaic_0001>

<llo_original>
// kernel: tpu_custom_call.1
$region0: #{tpu_custom_call.1}
  #allocation0 [shape = 'u32[]', space=smem, size = 0x4, offset = 0x4, fixed_abs, tag = 'smem constant byte address 0x4 - core index']
  #allocation1 [shape = 'u32[72,128]{1,0:T(1,128)}', space=vmem, size = 0x9000, scoped, tag = 'internal scratch']
  %s0 = inlined_call_operand.vmem [shape: f32[2,8,32], index: 0, kind: input, shape index: {}]
  %s1 = inlined_call_operand.hbm [shape: f32[4,2,16], index: 1, kind: input, shape index: {}]
  %s2 = inlined_call_operand.hbm [shape: f32[32,128], index: 2, kind: input, shape index: {}]
  %s3 = inlined_call_operand.vmem [shape: f32[1,128], index: 3, kind: input, shape index: {}]
  %s4 = inlined_call_operand.hbm [shape: f32[16,128], index: 4, kind: input, shape index: {}]
  %s5 = inlined_call_operand.vmem [shape: f32[1,128], index: 5, kind: input, shape index: {}]
  %s6 = inlined_call_operand.vmem [shape: f32[8,4], index: 6, kind: input, shape index: {}]
  %s7 = inlined_call_operand.vmem [shape: f32[8,1], index: 7, kind: input, shape index: {}]
  %s8 = inlined_call_operand.vmem [shape: f32[1,128], index: 8, kind: input, shape index: {}]
  %s9 = inlined_call_operand.hbm [shape: f32[2,32], index: 9, kind: output, shape index: {0}]
  %s10 = inlined_call_operand.hbm [shape: f32[2,8], index: 10, kind: output, shape index: {1}]
  %11 = xla_tuple %s9, %s10
  %s12 = sld [smem:[#allocation0]]
  $region66: #{tpu_custom_call.1} parent=0
    _
  %s14 = ssub.s32 1, %s12
  %s15 = scalar_select 0, %s14, %s12
  $region1: #{tpu_custom_call.1} parent=0
    #allocation2 [shape = 'u8[4096]{0}', space=vmem, size = 0x1000, scoped, tag = 'input window, operand 1, single buffered']
    #allocation3 [shape = 's32[1]{0}', space=sflag, size = 0x4, scoped, tag = 'scoped memory for tpu_custom_call.1']
    #allocation4 [shape = 's32[1]{0}', space=sflag, size = 0x4, scoped, tag = 'scoped memory for tpu_custom_call.1']
    #allocation5 [shape = 'u8[16384]{0}', space=vmem, size = 0x4000, scoped, tag = 'input window, operand 2, single buffered']
    #allocation6 [shape = 's32[1]{0}', space=sflag, size = 0x4, scoped, tag = 'scoped memory for tpu_custom_call.1']
    #allocation7 [shape = 'u8[8192]{0}', space=vmem, size = 0x2000, scoped, tag = 'input window, operand 4, single buffered']
    #allocation8 [shape = 'u8[1024]{0}', space=vmem, size = 0x400, scoped, tag = 'output window, operand 0, single buffered']
    #allocation9 [shape = 'u8[1024]{0}', space=vmem, size = 0x400, scoped, tag = 'output window, operand 1, single buffered']
    #allocation10 [shape = 's32[1]{0}', space=sflag, size = 0x4, scoped, tag = 'scoped memory for tpu_custom_call.1']
    %16 = vsyncpa [#allocation3], 0
    %17 = vsyncpa [#allocation6], 0
    %18 = vsyncpa [#allocation4], 0
    %19 = vsyncpa [#allocation10], 0
    // Predicated region
    $region2: #{tpu_custom_call.1} parent=1 // pred_check
      _
    $region3: #{tpu_custom_call.1} parent=1 // pred_check_branch
      %21 = sbr.rel (0) target = $region5
    $region4: #{tpu_custom_call.1} parent=1 // pred_region
      _
    $region5: #{tpu_custom_call.1} parent=1 // pred_fallthru
      _
    // Predicated region
    $region6: #{tpu_custom_call.1} parent=1 // pred_check
      _
    $region7: #{tpu_custom_call.1} parent=1 // pred_check_branch
      %23 = sbr.rel (0) target = $region9
    $region8: #{tpu_custom_call.1} parent=1 // pred_region
      %25 = vsyncadd [#allocation3], 0
      %s26 = sshll.u32 %s1, 4
      %s27 = int_to_ptr.hbm [resolvable:$true] %s26
      %s28 = sshll.u32 [#allocation2], 4
      %s29 = int_to_ptr.vmem [resolvable:$true] %s28
      %34 = dma.hbm_to_vmem [thread:$0]  %s27, 128, %s29, [#allocation3], 32, 32, 2
    $region9: #{tpu_custom_call.1} parent=1 // pred_fallthru
      _
    // Predicated region
    $region10: #{tpu_custom_call.1} parent=1 // pred_check
      _
    $region11: #{tpu_custom_call.1} parent=1 // pred_check_branch
      %36 = sbr.rel (0) target = $region13
    $region12: #{tpu_custom_call.1} parent=1 // pred_region
      %38 = vsyncadd [#allocation6], 0
      %s39 = sshll.u32 %s2, 4
      %s40 = int_to_ptr.hbm [resolvable:$true] %s39
      %s41 = sshll.u32 [#allocation5], 4
      %s42 = int_to_ptr.vmem [resolvable:$true] %s41
      %47 = dma.hbm_to_vmem [thread:$0]  %s40, 512, %s42, [#allocation6], 128, 128, 8
    $region13: #{tpu_custom_call.1} parent=1 // pred_fallthru
      _
    // Predicated region
    $region14: #{tpu_custom_call.1} parent=1 // pred_check
      _
    $region15: #{tpu_custom_call.1} parent=1 // pred_check_branch
      %49 = sbr.rel (0) target = $region17
    $region16: #{tpu_custom_call.1} parent=1 // pred_region
      _
    $region17: #{tpu_custom_call.1} parent=1 // pred_fallthru
      _
    // Predicated region
    $region18: #{tpu_custom_call.1} parent=1 // pred_check
      _
    $region19: #{tpu_custom_call.1} parent=1 // pred_check_branch
      %51 = sbr.rel (0) target = $region21
    $region20: #{tpu_custom_call.1} parent=1 // pred_region
      %53 = vsyncadd [#allocation6], 0
      %s54 = sshll.u32 %s4, 4
      %s55 = int_to_ptr.hbm [resolvable:$true] %s54
      %s56 = sshll.u32 [#allocation7], 4
      %s57 = int_to_ptr.vmem [resolvable:$true] %s56
      %62 = dma.hbm_to_vmem [thread:$0]  %s55, 256, %s57, [#allocation6], 128, 128, 8
    $region21: #{tpu_custom_call.1} parent=1 // pred_fallthru
      _
    // Predicated region
    $region22: #{tpu_custom_call.1} parent=1 // pred_check
      _
    $region23: #{tpu_custom_call.1} parent=1 // pred_check_branch
      %64 = sbr.rel (0) target = $region25
    $region24: #{tpu_custom_call.1} parent=1 // pred_region
      _
    $region25: #{tpu_custom_call.1} parent=1 // pred_fallthru
      _
    // Predicated region
    $region26: #{tpu_custom_call.1} parent=1 // pred_check
      _
    $region27: #{tpu_custom_call.1} parent=1 // pred_check_branch
      %66 = sbr.rel (0) target = $region29
    $region28: #{tpu_custom_call.1} parent=1 // pred_region
      _
    $region29: #{tpu_custom_call.1} parent=1 // pred_fallthru
      _
    // Predicated region
    $region30: #{tpu_custom_call.1} parent=1 // pred_check
      _
    $region31: #{tpu_custom_call.1} parent=1 // pred_check_branch
      %68 = sbr.rel (0) target = $region33
    $region32: #{tpu_custom_call.1} parent=1 // pred_region
      _
    $region33: #{tpu_custom_call.1} parent=1 // pred_fallthru
      _
    // Predicated region
    $region34: #{tpu_custom_call.1} parent=1 // pred_check
      _
    $region35: #{tpu_custom_call.1} parent=1 // pred_check_branch
      %70 = sbr.rel (0) target = $region37
    $region36: #{tpu_custom_call.1} parent=1 // pred_region
      _
    $region37: #{tpu_custom_call.1} parent=1 // pred_fallthru
      _
    // Predicated region
    $region38: #{tpu_custom_call.1} parent=1 // pred_check
      _
    $region39: #{tpu_custom_call.1} parent=1 // pred_check_branch
      %72 = sbr.rel (0) target = $region41
    $region40: #{tpu_custom_call.1} parent=1 // pred_region
      %74 = dma.done [#allocation3], 128
    $region41: #{tpu_custom_call.1} parent=1 // pred_fallthru
      _
    // Predicated region
    $region42: #{tpu_custom_call.1} parent=1 // pred_check
      _
    $region43: #{tpu_custom_call.1} parent=1 // pred_check_branch
      %76 = sbr.rel (0) target = $region45
    $region44: #{tpu_custom_call.1} parent=1 // pred_region
      %78 = dma.done [#allocation6], 512
    $region45: #{tpu_custom_call.1} parent=1 // pred_fallthru
      _
    // Predicated region
    $region46: #{tpu_custom_call.1} parent=1 // pred_check
      _
    $region47: #{tpu_custom_call.1} parent=1 // pred_check_branch
      %80 = sbr.rel (0) target = $region49
    $region48: #{tpu_custom_call.1} parent=1 // pred_region
      %82 = dma.done [#allocation6], 256
    $region49: #{tpu_custom_call.1} parent=1 // pred_fallthru
      _
    %v83 = vld [vmem:[%s0] sm:$0xff]
    %v84 = vld [vmem:[%s0 + $0x8] sm:$0xff]
    %v85 = vld [vmem:[#allocation5] sm:$0xff]
    %v86 = vld [vmem:[#allocation5 + $0x8] sm:$0xff]
    %v87 = vld [vmem:[#allocation5 + $0x10] sm:$0xff]
    %v88 = vld [vmem:[#allocation5 + $0x18] sm:$0xff]
    %v89 = vld [vmem:[%s3] sm:$0x1]
    %v91 = vperm.slane %v89, 0
    %vm93 = vcmask 261120
    %v95 = vsel %vm93, %v83, 0
    %v98 = vsel %vm93, %v84, 0
    %100 = vmatpush.msra.mxu0 0.0
    %101 = vmatpush.msra.mxu0 0.0
    %102 = vmatpush.msra.mxu0 0.0
    %103 = vmatpush.msra.mxu0 0.0
    %104 = vmatpush.msra.mxu0 0.0
    %105 = vmatpush.msra.mxu0 0.0
    %106 = vmatpush.msra.mxu0 0.0
    %107 = vmatpush.msra.mxu0 0.0
    %108 = vmatpush.msra.mxu0 0.0
    %109 = vmatpush.msra.mxu0 0.0
    %110 = vmatpush.msra.mxu0 0.0
    %111 = vmatpush.msra.mxu0 0.0
    %112 = vmatpush.msra.mxu0 %v88
    %113 = vmatpush.msra.mxu0 %v87
    %114 = vmatpush.msra.mxu0 %v86
    %115 = vmatpush.msra.mxu0 %v85
    %116 = vmatmul.f32.gmra.mxu0 %v95
    %v117 = vpop.f32.mrf.mxu0
    %v118 = vadd.f32 %v91, %v117
    %119 = vmatmul.f32.gmra.mxu0 %v98
    %v120 = vpop.f32.mrf.mxu0
    %v121 = vadd.f32 %v91, %v120
    %122 = vdwg.mxu0
    %v123 = vld [vmem:[#allocation7] sm:$0xff]
    %v124 = vld [vmem:[#allocation7 + $0x8] sm:$0xff]
    %v125 = vld [vmem:[%s6] sm:$0xff]
    %v126 = vld [vmem:[%s7] sm:$0xff]
    %vm127 = vcmask 31744
    %v128 = vsel %vm127, %v125, 0.0
    %129 = vadd.xlane.f32.xlu0 %v128
    %v130 = vpop.xlane.xlu0 %129
    %v131 = vld [vmem:[%s5] sm:$0x1]
    %v133 = vperm.slane %v131, 0
    %v135 = vmul.f32 %v130, %v133
    %137 = vset.pattern.permute.xlu0 0
    %138 = vperm.xlu0 %137, %v126
    %v139 = vpop.permute.xlu0 %138
    %v141 = vadd.f32 %v139, %v135
    %v142 = vld [vmem:[#allocation2] sm:$0x3]
    %vm143 = vcmask 130048
    %v145 = vsel %vm143, %v142, 0
    %147 = vmatpush.msra.mxu0 0.0
    %148 = vmatpush.msra.mxu0 0.0
    %149 = vmatpush.msra.mxu0 0.0
    %150 = vmatpush.msra.mxu0 0.0
    %151 = vmatpush.msra.mxu0 0.0
    %152 = vmatpush.msra.mxu0 0.0
    %153 = vmatpush.msra.mxu0 0.0
    %154 = vmatpush.msra.mxu0 0.0
    %155 = vmatpush.msra.mxu0 0.0
    %156 = vmatpush.msra.mxu0 0.0
    %157 = vmatpush.msra.mxu0 0.0
    %158 = vmatpush.msra.mxu0 0.0
    %159 = vmatpush.msra.mxu0 0.0
    %160 = vmatpush.msra.mxu0 0.0
    %161 = vmatpush.msra.mxu0 %v124
    %162 = vmatpush.msra.mxu0 %v123
    %163 = vmatmul.f32.gmra.mxu0 %v145
    %v164 = vpop.f32.mrf.mxu0
    %v165 = vadd.f32 0.0, %v164
    %166 = vdwg.mxu0
    %v168 = vrot.slane %v165, 1
    %170 = vset.pattern.permute.xlu0 0
    %171 = vperm.xlu0 %170, %v125
    %v172 = vpop.permute.xlu0 %171
    %v174 = vperm.slane %v165, 0
    %v175 = vperm.slane %v168, 0
    %v178 = vmul.f32 %v172, %v174
    %v179 = vmul.f32 %v172, %v175
    %v180 = vadd.f32 %v141, %v178
    %v181 = vadd.f32 %v141, %v179
    %s182 = scalar_lea.vmem [#allocation2], 2
    %v183 = vld [vmem:[%s182] sm:$0x3]
    %v185 = vsel %vm143, %v183, 0
    %187 = vmatpush.msra.mxu0 0.0
    %188 = vmatpush.msra.mxu0 0.0
    %189 = vmatpush.msra.mxu0 0.0
    %190 = vmatpush.msra.mxu0 0.0
    %191 = vmatpush.msra.mxu0 0.0
    %192 = vmatpush.msra.mxu0 0.0
    %193 = vmatpush.msra.mxu0 0.0
    %194 = vmatpush.msra.mxu0 0.0
    %195 = vmatpush.msra.mxu0 0.0
    %196 = vmatpush.msra.mxu0 0.0
    %197 = vmatpush.msra.mxu0 0.0
    %198 = vmatpush.msra.mxu0 0.0
    %199 = vmatpush.msra.mxu0 0.0
    %200 = vmatpush.msra.mxu0 0.0
    %201 = vmatpush.msra.mxu0 %v124
    %202 = vmatpush.msra.mxu0 %v123
    %203 = vmatmul.f32.gmra.mxu0 %v185
    %v204 = vpop.f32.mrf.mxu0
    %v205 = vadd.f32 0.0, %v204
    %206 = vdwg.mxu0
    %v208 = vrot.slane %v205, 1
    %209 = vset.pattern.permute.xlu0 1
    %210 = vperm.xlu0 %209, %v125
    %v211 = vpop.permute.xlu0 %210
    %v213 = vperm.slane %v205, 0
    %v214 = vperm.slane %v208, 0
    %v217 = vmul.f32 %v211, %v213
    %v218 = vmul.f32 %v211, %v214
    %v219 = vadd.f32 %v180, %v217
    %v220 = vadd.f32 %v181, %v218
    %s221 = scalar_lea.vmem [#allocation2], 4
    %v222 = vld [vmem:[%s221] sm:$0x3]
    %v224 = vsel %vm143, %v222, 0
    %226 = vmatpush.msra.mxu0 0.0
    %227 = vmatpush.msra.mxu0 0.0
    %228 = vmatpush.msra.mxu0 0.0
    %229 = vmatpush.msra.mxu0 0.0
    %230 = vmatpush.msra.mxu0 0.0
    %231 = vmatpush.msra.mxu0 0.0
    %232 = vmatpush.msra.mxu0 0.0
    %233 = vmatpush.msra.mxu0 0.0
    %234 = vmatpush.msra.mxu0 0.0
    %235 = vmatpush.msra.mxu0 0.0
    %236 = vmatpush.msra.mxu0 0.0
    %237 = vmatpush.msra.mxu0 0.0
    %238 = vmatpush.msra.mxu0 0.0
    %239 = vmatpush.msra.mxu0 0.0
    %240 = vmatpush.msra.mxu0 %v124
    %241 = vmatpush.msra.mxu0 %v123
    %242 = vmatmul.f32.gmra.mxu0 %v224
    %v243 = vpop.f32.mrf.mxu0
    %v244 = vadd.f32 0.0, %v243
    %245 = vdwg.mxu0
    %v247 = vrot.slane %v244, 1
    %248 = vset.pattern.permute.xlu0 2
    %249 = vperm.xlu0 %248, %v125
    %v250 = vpop.permute.xlu0 %249
    %v252 = vperm.slane %v244, 0
    %v253 = vperm.slane %v247, 0
    %v256 = vmul.f32 %v250, %v252
    %v257 = vmul.f32 %v250, %v253
    %v258 = vadd.f32 %v219, %v256
    %v259 = vadd.f32 %v220, %v257
    %s260 = scalar_lea.vmem [#allocation2], 6
    %v261 = vld [vmem:[%s260] sm:$0x3]
    %v263 = vsel %vm143, %v261, 0
    %265 = vmatpush.msra.mxu0 0.0
    %266 = vmatpush.msra.mxu0 0.0
    %267 = vmatpush.msra.mxu0 0.0
    %268 = vmatpush.msra.mxu0 0.0
    %269 = vmatpush.msra.mxu0 0.0
    %270 = vmatpush.msra.mxu0 0.0
    %271 = vmatpush.msra.mxu0 0.0
    %272 = vmatpush.msra.mxu0 0.0
    %273 = vmatpush.msra.mxu0 0.0
    %274 = vmatpush.msra.mxu0 0.0
    %275 = vmatpush.msra.mxu0 0.0
    %276 = vmatpush.msra.mxu0 0.0
    %277 = vmatpush.msra.mxu0 0.0
    %278 = vmatpush.msra.mxu0 0.0
    %279 = vmatpush.msra.mxu0 %v124
    %280 = vmatpush.msra.mxu0 %v123
    %281 = vmatmul.f32.gmra.mxu0 %v263
    %v282 = vpop.f32.mrf.mxu0
    %v283 = vadd.f32 0.0, %v282
    %284 = vdwg.mxu0
    %v286 = vrot.slane %v283, 1
    %287 = vset.pattern.permute.xlu0 3
    %288 = vperm.xlu0 %287, %v125
    %v289 = vpop.permute.xlu0 %288
    %v291 = vperm.slane %v283, 0
    %v292 = vperm.slane %v286, 0
    %v295 = vmul.f32 %v289, %v291
    %v296 = vmul.f32 %v289, %v292
    %v297 = vadd.f32 %v258, %v295
    %v298 = vadd.f32 %v259, %v296
    %v299 = vadd.f32 %v118, %v297
    %v300 = vadd.f32 %v121, %v298
    %v301 = vtanh.pop %v299
    %v302 = vtanh.pop %v300
    %v303 = vld [vmem:[%s8] sm:$0x1]
    %v305 = vperm.slane %v303, 0
    %v307 = vmul.f32 %v301, %v305
    %v308 = vmul.f32 %v302, %v305
    %309 = vadd.xlane.f32.xlu0 %v307
    %v310 = vpop.xlane.xlu0 %309
    %311 = vadd.xlane.f32.xlu0 %v308
    %v312 = vpop.xlane.xlu0 %311
    %v315 = vlaneseq
    %v316 = vand.u32 %v315, 127
    %v317 = vperm.slane %v310, %v316
    %v318 = vperm.slane %v312, %v316
    %vm319 = vcmask 1041409
    %v320 = vsel %vm319, %v318, %v317
    %vm322 = vcmask 58368
    %v323 = vsel %vm322, %v320, -inf
    %324 = vmax.xlane.f32.xlu0 %v323
    %v325 = vpop.xlane.xlu0 %324
    %v327 = vperm.slane %v325, 0
    %v328 = vperm.slane %v325, 1
    %v331 = vsub.f32 %v310, %v327
    %v332 = vsub.f32 %v312, %v328
    %v333 = vmul.f32 %v331, 1.442695
    %v334 = vpow.pop %v333
    %v335 = vmul.f32 %v332, 1.442695
    %v336 = vpow.pop %v335
    %339 = vset.pattern.permute.xlu0 0
    %340 = vperm.xlu0 %339, %v334
    %v341 = vpop.permute.xlu0 %340
    %342 = vset.pattern.permute.xlu0 0
    %343 = vperm.xlu0 %342, %v336
    %v344 = vpop.permute.xlu0 %343
    %v345 = vperm.slane %v341, %v316
    %v346 = vperm.slane %v344, %v316
    %v347 = vsel %vm319, %v346, %v345
    %v349 = vsel %vm322, %v347, 0.0
    %350 = vadd.xlane.f32.xlu0 %v349
    %v351 = vpop.xlane.xlu0 %350
    %v352 = vrcp.pop %v351
    %v354 = vperm.slane %v352, 0
    %v355 = vperm.slane %v352, 1
    %v358 = vmul.f32 %v334, %v354
    %v359 = vmul.f32 %v336, %v355
    %361 = vset.pattern.permute.xlu0 0
    %362 = vperm.xlu0 %361, %v358
    %v363 = vpop.permute.xlu0 %362
    %366 = vset.pattern.permute.xlu0 0
    %367 = vperm.xlu0 %366, %v359
    %v368 = vpop.permute.xlu0 %367
    %v370 = vmul.f32 %v83, %v363
    %v371 = vmul.f32 %v84, %v368
    %v372 = vsel %vm93, %v370, 0.0
    %v373 = vrot.slane %v372, 4
    %v374 = vadd.f32 %v372, %v373
    %v375 = vrot.slane %v374, 2
    %v376 = vadd.f32 %v374, %v375
    %v377 = vrot.slane %v376, 1
    %v378 = vadd.f32 %v376, %v377
    %v379 = vsel %vm93, %v371, 0.0
    %v380 = vrot.slane %v379, 4
    %v381 = vadd.f32 %v379, %v380
    %v382 = vrot.slane %v381, 2
    %v383 = vadd.f32 %v381, %v382
    %v384 = vrot.slane %v383, 1
    %v385 = vadd.f32 %v383, %v384
    %v388 = vsel %vm319, %v385, %v378
    %vm390 = vcmask 254976
    %391 = vst.msk [vmem:[#allocation8] sm:$0x3] %vm390, %v388
    %v392 = vperm.slane %v363, %v316
    %v393 = vperm.slane %v368, %v316
    %v394 = vsel %vm319, %v393, %v392
    %396 = vst.msk [vmem:[#allocation9] sm:$0x3] %vm322, %v394
    // Predicated region
    $region50: #{tpu_custom_call.1} parent=1 // pred_check
      _
    $region51: #{tpu_custom_call.1} parent=1 // pred_check_branch
      %398 = sbr.rel (0) target = $region53
    $region52: #{tpu_custom_call.1} parent=1 // pred_region
      %400 = vsyncadd [#allocation4], 0
      %s402 = sshll.u32 [#allocation8], 4
      %s403 = int_to_ptr.vmem [resolvable:$true] %s402
      %s404 = sshll.u32 %s9, 4
      %s405 = int_to_ptr.hbm [resolvable:$true] %s404
      %407 = dma.vmem_to_hbm [thread:$0]  %s403, 32, %s405, [#allocation4]
    $region53: #{tpu_custom_call.1} parent=1 // pred_fallthru
      _
    // Predicated region
    $region54: #{tpu_custom_call.1} parent=1 // pred_check
      _
    $region55: #{tpu_custom_call.1} parent=1 // pred_check_branch
      %409 = sbr.rel (0) target = $region57
    $region56: #{tpu_custom_call.1} parent=1 // pred_region
      %411 = vsyncadd [#allocation10], 0
      %s413 = sshll.u32 [#allocation9], 4
      %s414 = int_to_ptr.vmem [resolvable:$true] %s413
      %s415 = sshll.u32 %s10, 4
      %s416 = int_to_ptr.hbm [resolvable:$true] %s415
      %418 = dma.vmem_to_hbm [thread:$0]  %s414, 32, %s416, [#allocation10]
    $region57: #{tpu_custom_call.1} parent=1 // pred_fallthru
      _
    // Predicated region
    $region58: #{tpu_custom_call.1} parent=1 // pred_check
      _
    $region59: #{tpu_custom_call.1} parent=1 // pred_check_branch
      %420 = sbr.rel (0) target = $region61
    $region60: #{tpu_custom_call.1} parent=1 // pred_region
      %422 = dma.done [#allocation4], 32
    $region61: #{tpu_custom_call.1} parent=1 // pred_fallthru
      _
    // Predicated region
    $region62: #{tpu_custom_call.1} parent=1 // pred_check
      _
    $region63: #{tpu_custom_call.1} parent=1 // pred_check_branch
      %424 = sbr.rel (0) target = $region65
    $region64: #{tpu_custom_call.1} parent=1 // pred_region
      %426 = dma.done [#allocation10], 32
    $region65: #{tpu_custom_call.1} parent=1 // pred_fallthru
      _
    %427 = vsyncpa [#allocation3], 1
    %428 = vsyncpa [#allocation6], 1
    %429 = vsyncpa [#allocation4], 1
    %430 = vsyncpa [#allocation10], 1

</llo_original>
